<compile_context>
chip_gen: v5e
topology: v5e:2x2
jax: 0.10.0
libtpu: 0.0.40
codegen_flags: <defaults>
</compile_context>

<pallas_src>
import jax
import jax.numpy as jnp
from jax.experimental import pallas as pl
from jax.experimental.pallas import tpu as pltpu


def _round_up(x, m):
    return ((x + m - 1) // m) * m


def _vmem_capacity_bytes():
    try:
        info = pltpu.get_tpu_info()
        cap = getattr(info, "vmem_capacity_bytes", None)
        if cap:
            return int(cap)
    except Exception:
        pass
    return 64 * 1024 * 1024  # v7x per-TC size: safe lower bound everywhere


# ----------------------------- kernels --------------------------------------

def _proj_kernel_resident(x_ref, w1_ref, b1_ref, w2_ref, b2_ref, o_ref):
    # Whole hidden dim resident: single pass, no accumulator scratch.
    x = x_ref[...].astype(w1_ref.dtype)                       # in-kernel cast
    h = jnp.dot(x, w1_ref[...], preferred_element_type=jnp.float32)
    h = jnp.maximum(h + b1_ref[...], 0.0)                     # f32 bias + relu
    o = jnp.dot(h.astype(w2_ref.dtype), w2_ref[...],
                preferred_element_type=jnp.float32)
    o_ref[...] = (o + b2_ref[...]).astype(o_ref.dtype)


def _proj_kernel_htiled(x_ref, w1_ref, b1_ref, w2_ref, b2_ref, o_ref, acc_ref):
    # Hidden dim tiled across grid axis 1 ("arbitrary"); f32 accumulator.
    hb = pl.program_id(1)

    @pl.when(hb == 0)
    def _():
        acc_ref[...] = jnp.zeros_like(acc_ref)

    x = x_ref[...].astype(w1_ref.dtype)
    h = jnp.dot(x, w1_ref[...], preferred_element_type=jnp.float32)
    h = jnp.maximum(h + b1_ref[...], 0.0)
    acc_ref[...] += jnp.dot(h.astype(w2_ref.dtype), w2_ref[...],
                            preferred_element_type=jnp.float32)

    @pl.when(hb == pl.num_programs(1) - 1)
    def _():
        o_ref[...] = (acc_ref[...] + b2_ref[...]).astype(o_ref.dtype)


# --------------------------- tile selection ----------------------------------

def _select_tiles(n, d_in, h_pad, p_pad, x_bytes, w_bytes, out_bytes,
                  budget, tm_target, row_align, hidden_tile):
    # Hidden-tile candidates: multiples of 128 that divide h_pad (ascending).
    h_cands = [d for d in range(128, h_pad + 1, 128) if h_pad % d == 0]
    if hidden_tile is not None:
        cap = min(_round_up(hidden_tile, 128), h_pad)
        filtered = [d for d in h_cands if d <= cap]
        h_cands = filtered if filtered else [h_cands[0]]

    def footprint(tm, th):
        fp = 2 * tm * d_in * x_bytes                  # x tile (double-buffered)
        fp += 2 * d_in * th * w_bytes                 # w1 block
        fp += 2 * th * p_pad * w_bytes                # w2 block
        fp += 2 * 8 * th * 4 + 2 * 8 * p_pad * 4      # f32 biases (sublane pad)
        fp += 2 * tm * p_pad * out_bytes              # output tile
        fp += tm * th * 4                             # f32 intermediate h
        if th < h_pad:
            fp += tm * p_pad * 4                      # f32 accumulator scratch
        return fp

    # Row tile: start from target, cap so the row grid has >= 2 steps whenever
    # the batch allows it (v7x megacore), align to the sublane packing.
    tm = min(tm_target, _round_up(n, row_align))
    if n >= 2 * row_align:
        tm = min(tm, _round_up(-(-n // 2), row_align))
    tm = max(_round_up(tm, row_align), row_align)

    th = h_cands[-1]
    # Phase 1: keep weights resident, shrink the row tile (not below ~256).
    tm_floor = min(tm, max(row_align, 256))
    while footprint(tm, th) > budget and tm > tm_floor:
        tm = max(_round_up(tm // 2, row_align), row_align)
    # Phase 2: tile the hidden dim (weights streamed, f32 accumulator).
    hi = len(h_cands) - 1
    while footprint(tm, th) > budget and hi > 0:
        hi -= 1
        th = h_cands[hi]
    # Phase 3: last resort, shrink the row tile down to the alignment floor.
    while footprint(tm, th) > budget and tm > row_align:
        tm = max(_round_up(tm // 2, row_align), row_align)
    return tm, th


# ------------------------------ wrapper --------------------------------------

def make_projection_layer(w1, b1, w2, b2, *, compute_dtype=jnp.bfloat16,
                          tm=512, hidden_tile=None):
    """Build a jitted ProjectionLayer forward.

    w1: [input_dim, 2*proj_dim], b1: [2*proj_dim]
    w2: [2*proj_dim, proj_dim],  b2: [proj_dim]
    (transposed layout vs torch.nn.Linear weights)
    """
    d_in, hidden = w1.shape
    proj_dim = w2.shape[1]
    assert w2.shape[0] == hidden and b1.shape == (hidden,) and b2.shape == (proj_dim,)

    h_pad = _round_up(hidden, 128)
    p_pad = _round_up(proj_dim, 128)

    # Pad + cast parameters ONCE (outside the per-call hot path).  Zero padding
    # provably contributes 0 through relu and both matmuls.
    w1p = jnp.pad(w1, ((0, 0), (0, h_pad - hidden))).astype(compute_dtype)
    w2p = jnp.pad(w2, ((0, h_pad - hidden), (0, p_pad - proj_dim))).astype(compute_dtype)
    b1p = jnp.pad(b1.astype(jnp.float32), (0, h_pad - hidden)).reshape(1, h_pad)
    b2p = jnp.pad(b2.astype(jnp.float32), (0, p_pad - proj_dim)).reshape(1, p_pad)

    w_bytes = jnp.dtype(compute_dtype).itemsize
    row_align = 8 if w_bytes >= 4 else 16          # f32 sublane 8, bf16 packed 16

    vmem_cap = _vmem_capacity_bytes()
    budget = int(vmem_cap * 0.65)                  # ~83 MiB v5e/v6e, ~41 MiB v7x
    vmem_limit = int(vmem_cap * 0.75)              # explicit scoped-VMEM request

    def apply(x):
        assert x.shape[-1] == d_in
        lead = x.shape[:-1]
        x2 = x.reshape(-1, d_in)
        n = x2.shape[0]
        x_bytes = x2.dtype.itemsize
        out_bytes = x2.dtype.itemsize

        tm_eff, th = _select_tiles(n, d_in, h_pad, p_pad, x_bytes, w_bytes,
                                   out_bytes, budget, tm, row_align, hidden_tile)
        n_pad = _round_up(n, tm_eff)
        if n_pad != n:
            x2 = jnp.pad(x2, ((0, n_pad - n), (0, 0)))   # rows only; K untouched
        n_rows = n_pad // tm_eff
        n_h = h_pad // th

        flops = 2 * n_pad * d_in * h_pad + 2 * n_pad * h_pad * p_pad
        w_reads = 1 if n_h == 1 else n_rows
        bytes_accessed = (n_pad * d_in * x_bytes
                          + w_reads * (d_in * h_pad + h_pad * p_pad) * w_bytes
                          + (h_pad + p_pad) * 4
                          + n_pad * p_pad * out_bytes)
        cost = pl.CostEstimate(flops=flops, transcendentals=0,
                               bytes_accessed=bytes_accessed)
        compiler_params = pltpu.CompilerParams(
            dimension_semantics=(("parallel",) if n_h == 1
                                 else ("parallel", "arbitrary")),
            vmem_limit_bytes=vmem_limit)

        if n_h == 1:
            out = pl.pallas_call(
                _proj_kernel_resident,
                out_shape=jax.ShapeDtypeStruct((n_pad, p_pad), x2.dtype),
                grid=(n_rows,),
                in_specs=[
                    pl.BlockSpec((tm_eff, d_in), lambda i: (i, 0)),   # x tile
                    pl.BlockSpec((d_in, h_pad), lambda i: (0, 0)),    # w1 resident
                    pl.BlockSpec((1, h_pad), lambda i: (0, 0)),       # b1 resident
                    pl.BlockSpec((h_pad, p_pad), lambda i: (0, 0)),   # w2 resident
                    pl.BlockSpec((1, p_pad), lambda i: (0, 0)),       # b2 resident
                ],
                out_specs=pl.BlockSpec((tm_eff, p_pad), lambda i: (i, 0)),
                compiler_params=compiler_params,
                cost_estimate=cost,
            )(x2, w1p, b1p, w2p, b2p)
        else:
            out = pl.pallas_call(
                _proj_kernel_htiled,
                out_shape=jax.ShapeDtypeStruct((n_pad, p_pad), x2.dtype),
                grid=(n_rows, n_h),
                in_specs=[
                    pl.BlockSpec((tm_eff, d_in), lambda i, h: (i, 0)),  # x tile
                    pl.BlockSpec((d_in, th), lambda i, h: (0, h)),      # w1 H-block
                    pl.BlockSpec((1, th), lambda i, h: (0, h)),         # b1 H-block
                    pl.BlockSpec((th, p_pad), lambda i, h: (h, 0)),     # w2 H-block
                    pl.BlockSpec((1, p_pad), lambda i, h: (0, 0)),      # b2 resident
                ],
                out_specs=pl.BlockSpec((tm_eff, p_pad), lambda i, h: (i, 0)),
                scratch_shapes=[pltpu.VMEM((tm_eff, p_pad), jnp.float32)],
                compiler_params=compiler_params,
                cost_estimate=cost,
            )(x2, w1p, b1p, w2p, b2p)

        if n_pad != n or p_pad != proj_dim:
            out = out[:n, :proj_dim]
        return out.reshape(*lead, proj_dim)

    return jax.jit(apply)


def projection_layer(x, w1, b1, w2, b2, **kwargs):
    """One-shot convenience wrapper (for repeated calls use make_projection_layer)."""
    return make_projection_layer(w1, b1, w2, b2, **kwargs)(x)


def _reference(x, w1, b1, w2, b2):
    h = jnp.maximum(x @ w1 + b1, 0.0)
    return h @ w2 + b2


if __name__ == "__main__":
    key = jax.random.PRNGKey(0)
    kx, kw1, kb1, kw2, kb2, kx2, kw3, kb3, kw4, kb4 = jax.random.split(key, 10)

    # ----- config 1: small shapes straight from the module ------------------
    input_dim, proj_dim, batch = 32, 16, 8
    bound1 = 1.0 / (input_dim ** 0.5)
    bound2 = 1.0 / ((2 * proj_dim) ** 0.5)
    w1 = jax.random.uniform(kw1, (input_dim, 2 * proj_dim), jnp.float32, -bound1, bound1)
    b1 = jax.random.uniform(kb1, (2 * proj_dim,), jnp.float32, -bound1, bound1)
    w2 = jax.random.uniform(kw2, (2 * proj_dim, proj_dim), jnp.float32, -bound2, bound2)
    b2 = jax.random.uniform(kb2, (proj_dim,), jnp.float32, -bound2, bound2)
    x = jax.random.normal(kx, (batch, input_dim), jnp.float32)
    ref = _reference(x, w1, b1, w2, b2)

    # f32 MXU operands (resident-weights path).
    layer_f32 = make_projection_layer(w1, b1, w2, b2, compute_dtype=jnp.float32)
    out_f32 = jax.block_until_ready(layer_f32(x))
    assert out_f32.shape == (batch, proj_dim)
    assert jnp.allclose(out_f32, ref, atol=1e-2, rtol=1e-2)

    # bf16 MXU operands with f32 accumulation (default fast path).
    layer_bf16 = make_projection_layer(w1, b1, w2, b2)
    out_bf16 = jax.block_until_ready(layer_bf16(x))
    assert out_bf16.shape == (batch, proj_dim)
    assert jnp.allclose(out_bf16, ref, atol=5e-2, rtol=5e-2)

    # ----- config 2: force the hidden-tiled accumulator path ----------------
    input_dim2, proj_dim2 = 32, 128          # hidden = 256 -> two 128-wide H tiles
    bound3 = 1.0 / (input_dim2 ** 0.5)
    bound4 = 1.0 / ((2 * proj_dim2) ** 0.5)
    w3 = jax.random.uniform(kw3, (input_dim2, 2 * proj_dim2), jnp.float32, -bound3, bound3)
    b3 = jax.random.uniform(kb3, (2 * proj_dim2,), jnp.float32, -bound3, bound3)
    w4 = jax.random.uniform(kw4, (2 * proj_dim2, proj_dim2), jnp.float32, -bound4, bound4)
    b4 = jax.random.uniform(kb4, (proj_dim2,), jnp.float32, -bound4, bound4)
    x2 = jax.random.normal(kx2, (batch, input_dim2), jnp.float32)
    ref2 = _reference(x2, w3, b3, w4, b4)

    layer_tiled = make_projection_layer(w3, b3, w4, b4,
                                        compute_dtype=jnp.float32, hidden_tile=128)
    out_tiled = jax.block_until_ready(layer_tiled(x2))
    assert out_tiled.shape == (batch, proj_dim2)
    assert jnp.allclose(out_tiled, ref2, atol=1e-2, rtol=1e-2)

    print("KERNEL_OK")
</pallas_src>

<mosaic_0001>
module attributes {stable_mosaic.version = 11 : i64} {
  func.func @_proj_kernel_resident(%arg0: i32, %arg1: memref<8x32xf32, #tpu.memory_space<vmem>>, %arg2: memref<32x128xf32, #tpu.memory_space<vmem>>, %arg3: memref<1x128xf32, #tpu.memory_space<vmem>>, %arg4: memref<128x128xf32, #tpu.memory_space<vmem>>, %arg5: memref<1x128xf32, #tpu.memory_space<vmem>>, %arg6: memref<8x128xf32, #tpu.memory_space<vmem>>) attributes {dimension_semantics = [#tpu.dimension_semantics<parallel>], iteration_bounds = array<i64: 1>, scalar_prefetch = 0 : i64, scratch_operands = 0 : i64, tpu.core_type = #tpu.core_type<tc>, window_params = [{transform_indices = @transform_0, window_bounds = array<i64: 8, 32>}, {pipeline_mode = #tpu.pipeline_mode<synchronous>, transform_indices = @transform_1, window_bounds = array<i64: 32, 128>}, {pipeline_mode = #tpu.pipeline_mode<synchronous>, transform_indices = @transform_2, window_bounds = array<i64: 1, 128>}, {pipeline_mode = #tpu.pipeline_mode<synchronous>, transform_indices = @transform_3, window_bounds = array<i64: 128, 128>}, {pipeline_mode = #tpu.pipeline_mode<synchronous>, transform_indices = @transform_4, window_bounds = array<i64: 1, 128>}, {transform_indices = @transform_5, window_bounds = array<i64: 8, 128>}]} {
    %c0 = arith.constant 0 : index
    %c0_0 = arith.constant 0 : index
    %0 = vector.load %arg1[%c0, %c0_0] : memref<8x32xf32, #tpu.memory_space<vmem>>, vector<8x32xf32>
    %c0_1 = arith.constant 0 : index
    %c0_2 = arith.constant 0 : index
    %1 = vector.load %arg2[%c0_1, %c0_2] : memref<32x128xf32, #tpu.memory_space<vmem>>, vector<32x128xf32>
    %cst = arith.constant dense<0.000000e+00> : vector<8x128xf32>
    %2 = tpu.matmul %0, %1, %cst {dimension_numbers = #tpu.dot_dimension_numbers<[1], [0], [0], [1], [0, 0, 1, 1], [], []>} : vector<8x32xf32>, vector<32x128xf32>, vector<8x128xf32> -> vector<8x128xf32>
    %c0_3 = arith.constant 0 : index
    %c0_4 = arith.constant 0 : index
    %3 = vector.load %arg3[%c0_3, %c0_4] : memref<1x128xf32, #tpu.memory_space<vmem>>, vector<1x128xf32>
    %4 = vector.broadcast %3 : vector<1x128xf32> to vector<8x128xf32>
    %5 = arith.addf %2, %4 : vector<8x128xf32>
    %cst_5 = arith.constant 0.000000e+00 : f32
    %6 = vector.broadcast %cst_5 : f32 to vector<8x128xf32>
    %7 = arith.maximumf %5, %6 : vector<8x128xf32>
    %c0_6 = arith.constant 0 : index
    %c0_7 = arith.constant 0 : index
    %8 = vector.load %arg4[%c0_6, %c0_7] : memref<128x128xf32, #tpu.memory_space<vmem>>, vector<128x128xf32>
    %cst_8 = arith.constant dense<0.000000e+00> : vector<8x128xf32>
    %9 = tpu.matmul %7, %8, %cst_8 {dimension_numbers = #tpu.dot_dimension_numbers<[1], [0], [0], [1], [0, 0, 1, 1], [], []>} : vector<8x128xf32>, vector<128x128xf32>, vector<8x128xf32> -> vector<8x128xf32>
    %c0_9 = arith.constant 0 : index
    %c0_10 = arith.constant 0 : index
    %10 = vector.load %arg5[%c0_9, %c0_10] : memref<1x128xf32, #tpu.memory_space<vmem>>, vector<1x128xf32>
    %11 = vector.broadcast %10 : vector<1x128xf32> to vector<8x128xf32>
    %12 = arith.addf %9, %11 : vector<8x128xf32>
    %c0_11 = arith.constant 0 : index
    %c0_12 = arith.constant 0 : index
    %13 = vector.load %arg6[%c0_11, %c0_12] : memref<8x128xf32, #tpu.memory_space<vmem>>, vector<8x128xf32>
    tpu.vector_store %arg6[%c0_11, %c0_12], %12 {strides = array<i32>} : memref<8x128xf32, #tpu.memory_space<vmem>>, vector<8x128xf32>,
    return
  }
  func.func @transform_0(%arg0: i32) -> (i32, i32) {
    %c0_i32 = arith.constant 0 : i32
    %c0_i32_0 = arith.constant 0 : i32
    return %arg0, %c0_i32 : i32, i32
  }
  func.func @transform_1(%arg0: i32) -> (i32, i32) {
    %c0_i32 = arith.constant 0 : i32
    %c0_i32_0 = arith.constant 0 : i32
    %c0_i32_1 = arith.constant 0 : i32
    return %c0_i32, %c0_i32_0 : i32, i32
  }
  func.func @transform_2(%arg0: i32) -> (i32, i32) {
    %c0_i32 = arith.constant 0 : i32
    %c0_i32_0 = arith.constant 0 : i32
    %c0_i32_1 = arith.constant 0 : i32
    return %c0_i32, %c0_i32_0 : i32, i32
  }
  func.func @transform_3(%arg0: i32) -> (i32, i32) {
    %c0_i32 = arith.constant 0 : i32
    %c0_i32_0 = arith.constant 0 : i32
    %c0_i32_1 = arith.constant 0 : i32
    return %c0_i32, %c0_i32_0 : i32, i32
  }
  func.func @transform_4(%arg0: i32) -> (i32, i32) {
    %c0_i32 = arith.constant 0 : i32
    %c0_i32_0 = arith.constant 0 : i32
    %c0_i32_1 = arith.constant 0 : i32
    return %c0_i32, %c0_i32_0 : i32, i32
  }
  func.func @transform_5(%arg0: i32) -> (i32, i32) {
    %c0_i32 = arith.constant 0 : i32
    %c0_i32_0 = arith.constant 0 : i32
    return %arg0, %c0_i32 : i32, i32
  }
}

</mosaic_0001>

<llo_original>
// kernel: apply.1
$region0: #{apply.1}
  #allocation0 [shape = 'u32[]', space=smem, size = 0x4, offset = 0x4, fixed_abs, tag = 'smem constant byte address 0x4 - core index']
  #allocation1 [shape = 'u32[72,128]{1,0:T(1,128)}', space=vmem, size = 0x9000, scoped, tag = 'internal scratch']
  %s0 = inlined_call_operand.hbm [shape: f32[8,32], index: 0, kind: input, shape index: {}]
  %s1 = inlined_call_operand.hbm [shape: f32[32,128], index: 1, kind: input, shape index: {}]
  %s2 = inlined_call_operand.hbm [shape: f32[1,128], index: 2, kind: input, shape index: {}]
  %s3 = inlined_call_operand.hbm [shape: f32[128,128], index: 3, kind: input, shape index: {}]
  %s4 = inlined_call_operand.vmem [shape: f32[1,128], index: 4, kind: input, shape index: {}]
  %s5 = inlined_call_operand.hbm [shape: f32[8,128], index: 5, kind: output, shape index: {}]
  %s6 = sld [smem:[#allocation0]]
  $region46: #{apply.1} parent=0
    _
  %s8 = ssub.s32 1, %s6
  %s9 = scalar_select 0, %s8, %s6
  $region1: #{apply.1} parent=0
    #allocation2 [shape = 'u8[4096]{0}', space=vmem, size = 0x1000, scoped, tag = 'input window, operand 0, single buffered']
    #allocation3 [shape = 's32[1]{0}', space=sflag, size = 0x4, scoped, tag = 'scoped memory for apply.1']
    #allocation4 [shape = 's32[1]{0}', space=sflag, size = 0x4, scoped, tag = 'scoped memory for apply.1']
    #allocation5 [shape = 'u8[16384]{0}', space=vmem, size = 0x4000, scoped, tag = 'input window, operand 1, single buffered']
    #allocation6 [shape = 's32[1]{0}', space=sflag, size = 0x4, scoped, tag = 'scoped memory for apply.1']
    #allocation7 [shape = 'u8[512]{0}', space=vmem, size = 0x400, scoped, tag = 'input window, operand 2, single buffered']
    #allocation8 [shape = 'u8[65536]{0}', space=vmem, size = 0x10000, scoped, tag = 'input window, operand 3, single buffered']
    #allocation9 [shape = 's32[1]{0}', space=sflag, size = 0x4, scoped, tag = 'scoped memory for apply.1']
    #allocation10 [shape = 'u8[4096]{0}', space=vmem, size = 0x1000, scoped, tag = 'output window, operand 0, single buffered']
    %10 = vsyncpa [#allocation3], 0
    %11 = vsyncpa [#allocation6], 0
    %12 = vsyncpa [#allocation9], 0
    %13 = vsyncpa [#allocation4], 0
    // Predicated region
    $region2: #{apply.1} parent=1 // pred_check
      _
    $region3: #{apply.1} parent=1 // pred_check_branch
      %15 = sbr.rel (0) target = $region5
    $region4: #{apply.1} parent=1 // pred_region
      %17 = vsyncadd [#allocation3], 0
      %s19 = sshll.u32 %s0, 4
      %s20 = int_to_ptr.hbm [resolvable:$true] %s19
      %s21 = sshll.u32 [#allocation2], 4
      %s22 = int_to_ptr.vmem [resolvable:$true] %s21
      %24 = dma.hbm_to_vmem [thread:$0]  %s20, 128, %s22, [#allocation3]
    $region5: #{apply.1} parent=1 // pred_fallthru
      _
    // Predicated region
    $region6: #{apply.1} parent=1 // pred_check
      _
    $region7: #{apply.1} parent=1 // pred_check_branch
      %26 = sbr.rel (0) target = $region9
    $region8: #{apply.1} parent=1 // pred_region
      %28 = vsyncadd [#allocation6], 0
      %s29 = sshll.u32 %s1, 4
      %s30 = int_to_ptr.hbm [resolvable:$true] %s29
      %s31 = sshll.u32 [#allocation5], 4
      %s32 = int_to_ptr.vmem [resolvable:$true] %s31
      %37 = dma.hbm_to_vmem [thread:$0]  %s30, 512, %s32, [#allocation6], 128, 128, 8
    $region9: #{apply.1} parent=1 // pred_fallthru
      _
    // Predicated region
    $region10: #{apply.1} parent=1 // pred_check
      _
    $region11: #{apply.1} parent=1 // pred_check_branch
      %39 = sbr.rel (0) target = $region13
    $region12: #{apply.1} parent=1 // pred_region
      %41 = vsyncadd [#allocation6], 0
      %s43 = sshll.u32 %s2, 4
      %s44 = int_to_ptr.hbm [resolvable:$true] %s43
      %s45 = sshll.u32 [#allocation7], 4
      %s46 = int_to_ptr.vmem [resolvable:$true] %s45
      %48 = dma.hbm_to_vmem [thread:$0]  %s44, 16, %s46, [#allocation6]
    $region13: #{apply.1} parent=1 // pred_fallthru
      _
    // Predicated region
    $region14: #{apply.1} parent=1 // pred_check
      _
    $region15: #{apply.1} parent=1 // pred_check_branch
      %50 = sbr.rel (0) target = $region17
    $region16: #{apply.1} parent=1 // pred_region
      %52 = vsyncadd [#allocation9], 0
      %s53 = sshll.u32 %s3, 4
      %s54 = int_to_ptr.hbm [resolvable:$true] %s53
      %s55 = sshll.u32 [#allocation8], 4
      %s56 = int_to_ptr.vmem [resolvable:$true] %s55
      %61 = dma.hbm_to_vmem [thread:$0]  %s54, 2048, %s56, [#allocation9], 128, 128, 8
    $region17: #{apply.1} parent=1 // pred_fallthru
      _
    // Predicated region
    $region18: #{apply.1} parent=1 // pred_check
      _
    $region19: #{apply.1} parent=1 // pred_check_branch
      %63 = sbr.rel (0) target = $region21
    $region20: #{apply.1} parent=1 // pred_region
      _
    $region21: #{apply.1} parent=1 // pred_fallthru
      _
    // Predicated region
    $region22: #{apply.1} parent=1 // pred_check
      _
    $region23: #{apply.1} parent=1 // pred_check_branch
      %65 = sbr.rel (0) target = $region25
    $region24: #{apply.1} parent=1 // pred_region
      %67 = dma.done [#allocation3], 128
    $region25: #{apply.1} parent=1 // pred_fallthru
      _
    // Predicated region
    $region26: #{apply.1} parent=1 // pred_check
      _
    $region27: #{apply.1} parent=1 // pred_check_branch
      %69 = sbr.rel (0) target = $region29
    $region28: #{apply.1} parent=1 // pred_region
      %71 = dma.done [#allocation6], 512
    $region29: #{apply.1} parent=1 // pred_fallthru
      _
    // Predicated region
    $region30: #{apply.1} parent=1 // pred_check
      _
    $region31: #{apply.1} parent=1 // pred_check_branch
      %73 = sbr.rel (0) target = $region33
    $region32: #{apply.1} parent=1 // pred_region
      %75 = dma.done [#allocation6], 16
    $region33: #{apply.1} parent=1 // pred_fallthru
      _
    // Predicated region
    $region34: #{apply.1} parent=1 // pred_check
      _
    $region35: #{apply.1} parent=1 // pred_check_branch
      %77 = sbr.rel (0) target = $region37
    $region36: #{apply.1} parent=1 // pred_region
      %79 = dma.done [#allocation9], 2048
    $region37: #{apply.1} parent=1 // pred_fallthru
      _
    %v80 = vld [vmem:[#allocation2] sm:$0xff]
    %v81 = vld [vmem:[#allocation5] sm:$0xff]
    %v82 = vld [vmem:[#allocation5 + $0x8] sm:$0xff]
    %v83 = vld [vmem:[#allocation5 + $0x10] sm:$0xff]
    %v84 = vld [vmem:[#allocation5 + $0x18] sm:$0xff]
    %v85 = vld [vmem:[#allocation7] sm:$0x1]
    %v87 = vperm.slane %v85, 0
    %vm89 = vcmask 261120
    %v91 = vsel %vm89, %v80, 0
    %93 = vmatpush.msra.mxu0 0.0
    %94 = vmatpush.msra.mxu0 0.0
    %95 = vmatpush.msra.mxu0 0.0
    %96 = vmatpush.msra.mxu0 0.0
    %97 = vmatpush.msra.mxu0 0.0
    %98 = vmatpush.msra.mxu0 0.0
    %99 = vmatpush.msra.mxu0 0.0
    %100 = vmatpush.msra.mxu0 0.0
    %101 = vmatpush.msra.mxu0 0.0
    %102 = vmatpush.msra.mxu0 0.0
    %103 = vmatpush.msra.mxu0 0.0
    %104 = vmatpush.msra.mxu0 0.0
    %105 = vmatpush.msra.mxu0 %v84
    %106 = vmatpush.msra.mxu0 %v83
    %107 = vmatpush.msra.mxu0 %v82
    %108 = vmatpush.msra.mxu0 %v81
    %109 = vmatmul.f32.gmra.mxu0 %v91
    %v110 = vpop.f32.mrf.mxu0
    %v111 = vadd.f32 %v87, %v110
    %112 = vdwg.mxu0
    %v113 = vmax.f32 %v111, 0.0
    %v114 = vld [vmem:[#allocation8] sm:$0xff]
    %v115 = vld [vmem:[#allocation8 + $0x8] sm:$0xff]
    %v116 = vld [vmem:[#allocation8 + $0x10] sm:$0xff]
    %v117 = vld [vmem:[#allocation8 + $0x18] sm:$0xff]
    %v118 = vld [vmem:[#allocation8 + $0x20] sm:$0xff]
    %v119 = vld [vmem:[#allocation8 + $0x28] sm:$0xff]
    %v120 = vld [vmem:[#allocation8 + $0x30] sm:$0xff]
    %v121 = vld [vmem:[#allocation8 + $0x38] sm:$0xff]
    %v122 = vld [vmem:[#allocation8 + $0x40] sm:$0xff]
    %v123 = vld [vmem:[#allocation8 + $0x48] sm:$0xff]
    %v124 = vld [vmem:[#allocation8 + $0x50] sm:$0xff]
    %v125 = vld [vmem:[#allocation8 + $0x58] sm:$0xff]
    %v126 = vld [vmem:[#allocation8 + $0x60] sm:$0xff]
    %v127 = vld [vmem:[#allocation8 + $0x68] sm:$0xff]
    %v128 = vld [vmem:[#allocation8 + $0x70] sm:$0xff]
    %v129 = vld [vmem:[#allocation8 + $0x78] sm:$0xff]
    %v130 = vld [vmem:[%s4] sm:$0x1]
    %v132 = vperm.slane %v130, 0
    %134 = vmatpush.msra.mxu0 %v129
    %135 = vmatpush.msra.mxu0 %v128
    %136 = vmatpush.msra.mxu0 %v127
    %137 = vmatpush.msra.mxu0 %v126
    %138 = vmatpush.msra.mxu0 %v125
    %139 = vmatpush.msra.mxu0 %v124
    %140 = vmatpush.msra.mxu0 %v123
    %141 = vmatpush.msra.mxu0 %v122
    %142 = vmatpush.msra.mxu0 %v121
    %143 = vmatpush.msra.mxu0 %v120
    %144 = vmatpush.msra.mxu0 %v119
    %145 = vmatpush.msra.mxu0 %v118
    %146 = vmatpush.msra.mxu0 %v117
    %147 = vmatpush.msra.mxu0 %v116
    %148 = vmatpush.msra.mxu0 %v115
    %149 = vmatpush.msra.mxu0 %v114
    %150 = vmatmul.f32.gmra.mxu0 %v113
    %v151 = vpop.f32.mrf.mxu0
    %v152 = vadd.f32 %v132, %v151
    %153 = vdwg.mxu0
    %154 = vst [vmem:[#allocation10] sm:$0xff] %v152
    // Predicated region
    $region38: #{apply.1} parent=1 // pred_check
      _
    $region39: #{apply.1} parent=1 // pred_check_branch
      %156 = sbr.rel (0) target = $region41
    $region40: #{apply.1} parent=1 // pred_region
      %158 = vsyncadd [#allocation4], 0
      %s160 = sshll.u32 [#allocation10], 4
      %s161 = int_to_ptr.vmem [resolvable:$true] %s160
      %s162 = sshll.u32 %s5, 4
      %s163 = int_to_ptr.hbm [resolvable:$true] %s162
      %165 = dma.vmem_to_hbm [thread:$0]  %s161, 128, %s163, [#allocation4]
    $region41: #{apply.1} parent=1 // pred_fallthru
      _
    // Predicated region
    $region42: #{apply.1} parent=1 // pred_check
      _
    $region43: #{apply.1} parent=1 // pred_check_branch
      %167 = sbr.rel (0) target = $region45
    $region44: #{apply.1} parent=1 // pred_region
      %169 = dma.done [#allocation4], 128
    $region45: #{apply.1} parent=1 // pred_fallthru
      _
    %170 = vsyncpa [#allocation3], 1
    %171 = vsyncpa [#allocation6], 1
    %172 = vsyncpa [#allocation9], 1
    %173 = vsyncpa [#allocation4], 1

</llo_original>
